<compile_context>
chip_gen: v7x
topology: tpu7x:2x2x1
jax: 0.10.0
libtpu: 0.0.40
codegen_flags: <defaults>
</compile_context>

<pallas_src>
import functools

import jax
import jax.numpy as jnp
from jax.experimental import pallas as pl
from jax.experimental.pallas import tpu as pltpu


# ----------------------------- Pallas kernel --------------------------------
def gcn_fused_kernel(a_ref, x_ref, w_ref, b_ref, o_ref, *, num_layers):
    """All GCN layers fused; layer loop statically unrolled (no grid)."""
    a = a_ref[...]                      # (n, n) bf16, resident for all layers
    h = x_ref[...].astype(jnp.float32)  # carried activation in f32
    last = num_layers - 1

    for l in range(num_layers):         # static Python unroll (compile-time constant)
        # Feature transform on the MXU (bf16 in, f32 accumulate): Z = H @ W_l
        z = jnp.dot(h.astype(jnp.bfloat16), w_ref[l],
                    preferred_element_type=jnp.float32)
        # Normalized aggregation: H' = A_hat @ Z + b_l  (bf16 in, f32 accumulate)
        h = jnp.dot(a, z.astype(jnp.bfloat16),
                    preferred_element_type=jnp.float32) + b_ref[l]
        # Hidden layers: ReLU.  Final layer: identity (logits) — compile-time branch.
        if l != last:
            h = jnp.maximum(h, 0.0)

    # Single lane-dense f32 store of the final logits.
    o_ref[...] = h


# --------------------------- wrapper (plain-JAX glue) -------------------------
def gcn_forward(a_norm, x, params, num_classes):
    """Fused multi-layer GCN forward: one pallas_call, no grid, layers unrolled."""
    n = a_norm.shape[0]
    num_layers = len(params)

    # Lane-dense padded feature width (covers in/hidden/out dims).
    dims = [x.shape[1]] + [w.shape[1] for (w, _) in params]
    f_pad = ((max(dims) + 127) // 128) * 128

    # Pack + zero-pad weights / biases so every layer works on (n, f_pad) tiles.
    w_packed = jnp.zeros((num_layers, f_pad, f_pad), jnp.float32)
    b_packed = jnp.zeros((num_layers, 1, f_pad), jnp.float32)
    for i, (w, b) in enumerate(params):
        w_packed = w_packed.at[i, : w.shape[0], : w.shape[1]].set(w)
        b_packed = b_packed.at[i, 0, : b.shape[0]].set(b)
    x_pad = jnp.zeros((n, f_pad), jnp.float32).at[:, : x.shape[1]].set(x)

    # bf16 at the kernel boundary (halves DMA bytes, 2x MXU rate); bias stays f32.
    a_bf = a_norm.astype(jnp.bfloat16)
    x_bf = x_pad.astype(jnp.bfloat16)
    w_bf = w_packed.astype(jnp.bfloat16)

    flops = num_layers * (2 * n * f_pad * f_pad + 2 * n * n * f_pad)
    bytes_accessed = (a_bf.size * 2 + x_bf.size * 2 + w_bf.size * 2
                      + b_packed.size * 4 + n * f_pad * 4)

    out = pl.pallas_call(
        functools.partial(gcn_fused_kernel, num_layers=num_layers),
        out_shape=jax.ShapeDtypeStruct((n, f_pad), jnp.float32),
        in_specs=[
            # A_hat: whole matrix, one DMA, resident across all (unrolled) layers.
            pl.BlockSpec((n, n), lambda: (0, 0)),
            # Padded node features, consumed once at layer 0.
            pl.BlockSpec((n, f_pad), lambda: (0, 0)),
            # All layer weights as one small slab (L * 32 KB).
            pl.BlockSpec((num_layers, f_pad, f_pad), lambda: (0, 0, 0)),
            # All layer biases.
            pl.BlockSpec((num_layers, 1, f_pad), lambda: (0, 0, 0)),
        ],
        out_specs=pl.BlockSpec((n, f_pad), lambda: (0, 0)),
        compiler_params=pltpu.CompilerParams(
            vmem_limit_bytes=4 * 1024 * 1024,   # working set < 256 KB
        ),
        cost_estimate=pl.CostEstimate(
            flops=flops, transcendentals=0, bytes_accessed=bytes_accessed),
    )(a_bf, x_bf, w_bf, b_packed)

    return out[:, :num_classes]


# ------------------------------- model setup ---------------------------------
def init_gcn_params(key, in_features, h_features, num_classes, n_layers):
    """Deterministic Glorot-uniform weights, zero bias (mirrors GraphConv init)."""
    dims = [in_features] + [h_features] * n_layers + [num_classes]
    params = []
    for i in range(len(dims) - 1):
        key, sub = jax.random.split(key)
        fan_in, fan_out = dims[i], dims[i + 1]
        limit = jnp.sqrt(6.0 / (fan_in + fan_out))
        w = jax.random.uniform(sub, (fan_in, fan_out), jnp.float32, -limit, limit)
        b = jnp.zeros((fan_out,), jnp.float32)
        params.append((w, b))
    return params


def normalized_adjacency(adj):
    """dgl.add_self_loop (A + I) + GraphConv(norm='both') normalization, densified."""
    n = adj.shape[0]
    a_hat = adj + jnp.eye(n, dtype=adj.dtype)
    deg = a_hat.sum(axis=1)
    d_inv_sqrt = 1.0 / jnp.sqrt(deg)
    return d_inv_sqrt[:, None] * a_hat * d_inv_sqrt[None, :]


# ------------------------------- references ----------------------------------
def gcn_reference_f32(a_norm, x, params):
    h = x
    last = len(params) - 1
    for i, (w, b) in enumerate(params):
        h = a_norm @ (h @ w) + b[None, :]
        if i != last:
            h = jnp.maximum(h, 0.0)
    return h


def gcn_reference_mixed(a_norm, x, params):
    """Emulates the kernel's numerics: f32 carry, bf16 casts only at MXU inputs."""
    a = a_norm.astype(jnp.bfloat16)
    h = x
    last = len(params) - 1
    for i, (w, b) in enumerate(params):
        z = jnp.dot(h.astype(jnp.bfloat16), w.astype(jnp.bfloat16),
                    preferred_element_type=jnp.float32)
        h = jnp.dot(a, z.astype(jnp.bfloat16),
                    preferred_element_type=jnp.float32) + b[None, :]
        if i != last:
            h = jnp.maximum(h, 0.0)
    return h


# ---------------------------------- main -------------------------------------
if __name__ == "__main__":
    N_NODES = 128
    IN_FEATURES = 32
    H_FEATURES = 64
    NUM_CLASSES = 8
    N_LAYERS = 2   # -> layers: (32->64 relu), (64->64 relu), (64->8)

    key = jax.random.PRNGKey(0)
    k_adj, k_feat, k_param = jax.random.split(key, 3)

    # Deterministic random undirected, self-loop-free graph.
    upper = jax.random.bernoulli(k_adj, 0.05, (N_NODES, N_NODES)).astype(jnp.float32)
    adj = jnp.maximum(upper, upper.T)
    adj = adj * (1.0 - jnp.eye(N_NODES, dtype=jnp.float32))
    a_norm = normalized_adjacency(adj)

    x = jax.random.normal(k_feat, (N_NODES, IN_FEATURES), jnp.float32)
    params = init_gcn_params(k_param, IN_FEATURES, H_FEATURES, NUM_CLASSES, N_LAYERS)

    # TODO(synk): nn.Dropout(p=dp) before layers i>0 is training-only stochastic
    # masking; eval-mode forward is identity, implemented as such.
    out = gcn_forward(a_norm, x, params, NUM_CLASSES)
    out = jax.block_until_ready(out)
    assert out.shape == (N_NODES, NUM_CLASSES)

    # Tight check against a numerics-matched JAX reference (f32 carry, bf16 MXU inputs).
    ref_mixed = gcn_reference_mixed(a_norm, x, params)
    assert jnp.allclose(out, ref_mixed, atol=1e-2, rtol=1e-2), \
        float(jnp.max(jnp.abs(out - ref_mixed)))

    # Loose sanity check against the original f32 semantics.
    ref_f32 = gcn_reference_f32(a_norm, x, params)
    assert jnp.allclose(out, ref_f32, atol=1e-1, rtol=1e-1), \
        float(jnp.max(jnp.abs(out - ref_f32)))

    print("KERNEL_OK")
</pallas_src>

<mosaic_0001>
module attributes {stable_mosaic.version = 11 : i64} {
  func.func @gcn_fused_kernel(%arg0: memref<128x128xbf16, #tpu.memory_space<vmem>>, %arg1: memref<128x128xbf16, #tpu.memory_space<vmem>>, %arg2: memref<3x128x128xbf16, #tpu.memory_space<vmem>>, %arg3: memref<3x1x128xf32, #tpu.memory_space<vmem>>, %arg4: memref<128x128xf32, #tpu.memory_space<vmem>>) attributes {dimension_semantics = [], scalar_prefetch = 0 : i64, scratch_operands = 0 : i64, tpu.core_type = #tpu.core_type<tc>} {
    %c0 = arith.constant 0 : index
    %c0_0 = arith.constant 0 : index
    %0 = vector.load %arg0[%c0, %c0_0] : memref<128x128xbf16, #tpu.memory_space<vmem>>, vector<128x128xbf16>
    %c0_1 = arith.constant 0 : index
    %c0_2 = arith.constant 0 : index
    %1 = vector.load %arg1[%c0_1, %c0_2] : memref<128x128xbf16, #tpu.memory_space<vmem>>, vector<128x128xbf16>
    %2 = arith.extf %1 : vector<128x128xbf16> to vector<128x128xf32>
    %3 = arith.truncf %2 : vector<128x128xf32> to vector<128x128xbf16>
    %c0_3 = arith.constant 0 : index
    %c0_4 = arith.constant 0 : index
    %c0_5 = arith.constant 0 : index
    %4 = vector.load %arg2[%c0_3, %c0_4, %c0_5] : memref<3x128x128xbf16, #tpu.memory_space<vmem>>, vector<1x128x128xbf16>
    %5 = vector.shape_cast %4 : vector<1x128x128xbf16> to vector<128x128xbf16>
    %cst = arith.constant dense<0.000000e+00> : vector<128x128xf32>
    %6 = tpu.matmul %3, %5, %cst {dimension_numbers = #tpu.dot_dimension_numbers<[1], [0], [0], [1], [0, 0, 1, 1], [], []>} : vector<128x128xbf16>, vector<128x128xbf16>, vector<128x128xf32> -> vector<128x128xf32>
    %7 = arith.truncf %6 : vector<128x128xf32> to vector<128x128xbf16>
    %cst_6 = arith.constant dense<0.000000e+00> : vector<128x128xf32>
    %8 = tpu.matmul %0, %7, %cst_6 {dimension_numbers = #tpu.dot_dimension_numbers<[1], [0], [0], [1], [0, 0, 1, 1], [], []>} : vector<128x128xbf16>, vector<128x128xbf16>, vector<128x128xf32> -> vector<128x128xf32>
    %c0_7 = arith.constant 0 : index
    %c0_8 = arith.constant 0 : index
    %c0_9 = arith.constant 0 : index
    %9 = vector.load %arg3[%c0_7, %c0_8, %c0_9] : memref<3x1x128xf32, #tpu.memory_space<vmem>>, vector<1x1x128xf32>
    %10 = vector.shape_cast %9 : vector<1x1x128xf32> to vector<1x128xf32>
    %11 = vector.broadcast %10 : vector<1x128xf32> to vector<128x128xf32>
    %12 = arith.addf %8, %11 : vector<128x128xf32>
    %cst_10 = arith.constant 0.000000e+00 : f32
    %13 = vector.broadcast %cst_10 : f32 to vector<128x128xf32>
    %14 = arith.maximumf %12, %13 : vector<128x128xf32>
    %15 = arith.truncf %14 : vector<128x128xf32> to vector<128x128xbf16>
    %c1 = arith.constant 1 : index
    %c0_11 = arith.constant 0 : index
    %c0_12 = arith.constant 0 : index
    %16 = vector.load %arg2[%c1, %c0_11, %c0_12] : memref<3x128x128xbf16, #tpu.memory_space<vmem>>, vector<1x128x128xbf16>
    %17 = vector.shape_cast %16 : vector<1x128x128xbf16> to vector<128x128xbf16>
    %cst_13 = arith.constant dense<0.000000e+00> : vector<128x128xf32>
    %18 = tpu.matmul %15, %17, %cst_13 {dimension_numbers = #tpu.dot_dimension_numbers<[1], [0], [0], [1], [0, 0, 1, 1], [], []>} : vector<128x128xbf16>, vector<128x128xbf16>, vector<128x128xf32> -> vector<128x128xf32>
    %19 = arith.truncf %18 : vector<128x128xf32> to vector<128x128xbf16>
    %cst_14 = arith.constant dense<0.000000e+00> : vector<128x128xf32>
    %20 = tpu.matmul %0, %19, %cst_14 {dimension_numbers = #tpu.dot_dimension_numbers<[1], [0], [0], [1], [0, 0, 1, 1], [], []>} : vector<128x128xbf16>, vector<128x128xbf16>, vector<128x128xf32> -> vector<128x128xf32>
    %c1_15 = arith.constant 1 : index
    %c0_16 = arith.constant 0 : index
    %c0_17 = arith.constant 0 : index
    %21 = vector.load %arg3[%c1_15, %c0_16, %c0_17] : memref<3x1x128xf32, #tpu.memory_space<vmem>>, vector<1x1x128xf32>
    %22 = vector.shape_cast %21 : vector<1x1x128xf32> to vector<1x128xf32>
    %23 = vector.broadcast %22 : vector<1x128xf32> to vector<128x128xf32>
    %24 = arith.addf %20, %23 : vector<128x128xf32>
    %cst_18 = arith.constant 0.000000e+00 : f32
    %25 = vector.broadcast %cst_18 : f32 to vector<128x128xf32>
    %26 = arith.maximumf %24, %25 : vector<128x128xf32>
    %27 = arith.truncf %26 : vector<128x128xf32> to vector<128x128xbf16>
    %c2 = arith.constant 2 : index
    %c0_19 = arith.constant 0 : index
    %c0_20 = arith.constant 0 : index
    %28 = vector.load %arg2[%c2, %c0_19, %c0_20] : memref<3x128x128xbf16, #tpu.memory_space<vmem>>, vector<1x128x128xbf16>
    %29 = vector.shape_cast %28 : vector<1x128x128xbf16> to vector<128x128xbf16>
    %cst_21 = arith.constant dense<0.000000e+00> : vector<128x128xf32>
    %30 = tpu.matmul %27, %29, %cst_21 {dimension_numbers = #tpu.dot_dimension_numbers<[1], [0], [0], [1], [0, 0, 1, 1], [], []>} : vector<128x128xbf16>, vector<128x128xbf16>, vector<128x128xf32> -> vector<128x128xf32>
    %31 = arith.truncf %30 : vector<128x128xf32> to vector<128x128xbf16>
    %cst_22 = arith.constant dense<0.000000e+00> : vector<128x128xf32>
    %32 = tpu.matmul %0, %31, %cst_22 {dimension_numbers = #tpu.dot_dimension_numbers<[1], [0], [0], [1], [0, 0, 1, 1], [], []>} : vector<128x128xbf16>, vector<128x128xbf16>, vector<128x128xf32> -> vector<128x128xf32>
    %c2_23 = arith.constant 2 : index
    %c0_24 = arith.constant 0 : index
    %c0_25 = arith.constant 0 : index
    %33 = vector.load %arg3[%c2_23, %c0_24, %c0_25] : memref<3x1x128xf32, #tpu.memory_space<vmem>>, vector<1x1x128xf32>
    %34 = vector.shape_cast %33 : vector<1x1x128xf32> to vector<1x128xf32>
    %35 = vector.broadcast %34 : vector<1x128xf32> to vector<128x128xf32>
    %36 = arith.addf %32, %35 : vector<128x128xf32>
    %c0_26 = arith.constant 0 : index
    %c0_27 = arith.constant 0 : index
    %37 = vector.load %arg4[%c0_26, %c0_27] : memref<128x128xf32, #tpu.memory_space<vmem>>, vector<128x128xf32>
    tpu.vector_store %arg4[%c0_26, %c0_27], %36 {strides = array<i32>} : memref<128x128xf32, #tpu.memory_space<vmem>>, vector<128x128xf32>,
    return
  }
}

</mosaic_0001>

<llo_original>
// kernel: tpu_custom_call.1
$region0: #{tpu_custom_call.1}
  #allocation0 [shape = 'u32[]', space=smem, size = 0x4, offset = 0x4, fixed_abs, tag = 'smem constant byte address 0x4 - core index']
  #allocation1 [shape = 'u32[144,128]{1,0:T(1,128)}', space=vmem, size = 0x12000, scoped, tag = 'internal scratch']
  %s0 = inlined_call_operand.hbm [shape: bf16[128,128], index: 0, kind: input, shape index: {}]
  %s1 = inlined_call_operand.hbm [shape: bf16[128,128], index: 1, kind: input, shape index: {}]
  %s2 = inlined_call_operand.hbm [shape: bf16[3,128,128], index: 2, kind: input, shape index: {}]
  %s3 = inlined_call_operand.vmem [shape: f32[3,1,128], index: 3, kind: input, shape index: {}]
  %s4 = inlined_call_operand.hbm [shape: f32[128,128], index: 4, kind: output, shape index: {}]
  %s5 = sld [smem:[#allocation0]]
  $region38: #{tpu_custom_call.1} parent=0
    _
  %s7 = ssub.s32 1, %s5
  %s8 = scalar_select 0, %s7, %s5
  $region1: #{tpu_custom_call.1} parent=0
    #allocation2 [shape = 'u8[32768]{0}', space=vmem, size = 0x8000, scoped, tag = 'input window, operand 0, single buffered']
    #allocation3 [shape = 's32[1]{0}', space=sflag, size = 0x4, scoped, tag = 'scoped memory for tpu_custom_call.1']
    #allocation4 [shape = 's32[1]{0}', space=sflag, size = 0x4, scoped, tag = 'scoped memory for tpu_custom_call.1']
    #allocation5 [shape = 'u8[32768]{0}', space=vmem, size = 0x8000, scoped, tag = 'input window, operand 1, single buffered']
    #allocation6 [shape = 's32[1]{0}', space=sflag, size = 0x4, scoped, tag = 'scoped memory for tpu_custom_call.1']
    #allocation7 [shape = 'u8[98304]{0}', space=vmem, size = 0x18000, scoped, tag = 'input window, operand 2, single buffered']
    #allocation8 [shape = 'u8[65536]{0}', space=vmem, size = 0x10000, scoped, tag = 'output window, operand 0, single buffered']
    %9 = vsyncpa [#allocation3], 0
    %10 = vsyncpa [#allocation6], 0
    %11 = vsyncpa [#allocation4], 0
    // Predicated region
    $region2: #{tpu_custom_call.1} parent=1 // pred_check
      _
    $region3: #{tpu_custom_call.1} parent=1 // pred_check_branch
      %13 = sbr.rel (0) target = $region5
    $region4: #{tpu_custom_call.1} parent=1 // pred_region
      %s15 = ssub.s32 1024, 1024
      %16 = vsyncadd [#allocation3], %s15
      %s17 = sshll.u32 [#allocation2], 4
      %s18 = int_to_ptr.vmem [resolvable:$true] %s17
      %23 = dma.hbm_to_vmem [thread:$0]  %s0, 1024, %s18, [#allocation3], 64, 64, 4
    $region5: #{tpu_custom_call.1} parent=1 // pred_fallthru
      _
    // Predicated region
    $region6: #{tpu_custom_call.1} parent=1 // pred_check
      _
    $region7: #{tpu_custom_call.1} parent=1 // pred_check_branch
      %25 = sbr.rel (0) target = $region9
    $region8: #{tpu_custom_call.1} parent=1 // pred_region
      %s27 = ssub.s32 1024, 1024
      %28 = vsyncadd [#allocation6], %s27
      %s29 = sshll.u32 [#allocation5], 4
      %s30 = int_to_ptr.vmem [resolvable:$true] %s29
      %35 = dma.hbm_to_vmem [thread:$0]  %s1, 1024, %s30, [#allocation6], 64, 64, 4
    $region9: #{tpu_custom_call.1} parent=1 // pred_fallthru
      _
    // Predicated region
    $region10: #{tpu_custom_call.1} parent=1 // pred_check
      _
    $region11: #{tpu_custom_call.1} parent=1 // pred_check_branch
      %37 = sbr.rel (0) target = $region13
    $region12: #{tpu_custom_call.1} parent=1 // pred_region
      %s39 = ssub.s32 3072, 3072
      %40 = vsyncadd [#allocation6], %s39
      %s41 = sshll.u32 [#allocation7], 4
      %s42 = int_to_ptr.vmem [resolvable:$true] %s41
      %47 = dma.hbm_to_vmem [thread:$0]  %s2, 3072, %s42, [#allocation6], 64, 64, 4
    $region13: #{tpu_custom_call.1} parent=1 // pred_fallthru
      _
    // Predicated region
    $region14: #{tpu_custom_call.1} parent=1 // pred_check
      _
    $region15: #{tpu_custom_call.1} parent=1 // pred_check_branch
      %49 = sbr.rel (0) target = $region17
    $region16: #{tpu_custom_call.1} parent=1 // pred_region
      _
    $region17: #{tpu_custom_call.1} parent=1 // pred_fallthru
      _
    // Predicated region
    $region18: #{tpu_custom_call.1} parent=1 // pred_check
      _
    $region19: #{tpu_custom_call.1} parent=1 // pred_check_branch
      %51 = sbr.rel (0) target = $region21
    $region20: #{tpu_custom_call.1} parent=1 // pred_region
      %52 = dma.done [#allocation3], 1024
    $region21: #{tpu_custom_call.1} parent=1 // pred_fallthru
      _
    // Predicated region
    $region22: #{tpu_custom_call.1} parent=1 // pred_check
      _
    $region23: #{tpu_custom_call.1} parent=1 // pred_check_branch
      %54 = sbr.rel (0) target = $region25
    $region24: #{tpu_custom_call.1} parent=1 // pred_region
      %55 = dma.done [#allocation6], 1024
    $region25: #{tpu_custom_call.1} parent=1 // pred_fallthru
      _
    // Predicated region
    $region26: #{tpu_custom_call.1} parent=1 // pred_check
      _
    $region27: #{tpu_custom_call.1} parent=1 // pred_check_branch
      %57 = sbr.rel (0) target = $region29
    $region28: #{tpu_custom_call.1} parent=1 // pred_region
      %58 = dma.done [#allocation6], 3072
    $region29: #{tpu_custom_call.1} parent=1 // pred_fallthru
      _
    %v60 = vld [vmem:[#allocation2] sm:$0xf]
    %v61 = vld [vmem:[#allocation2 + $0x4] sm:$0xf]
    %v62 = vld [vmem:[#allocation2 + $0x8] sm:$0xf]
    %v63 = vld [vmem:[#allocation2 + $0xc] sm:$0xf]
    %v64 = vld [vmem:[#allocation2 + $0x10] sm:$0xf]
    %v65 = vld [vmem:[#allocation2 + $0x14] sm:$0xf]
    %v66 = vld [vmem:[#allocation2 + $0x18] sm:$0xf]
    %v67 = vld [vmem:[#allocation2 + $0x1c] sm:$0xf]
    %v68 = vld [vmem:[#allocation2 + $0x20] sm:$0xf]
    %v69 = vld [vmem:[#allocation2 + $0x24] sm:$0xf]
    %v70 = vld [vmem:[#allocation2 + $0x28] sm:$0xf]
    %v71 = vld [vmem:[#allocation2 + $0x2c] sm:$0xf]
    %v72 = vld [vmem:[#allocation2 + $0x30] sm:$0xf]
    %v73 = vld [vmem:[#allocation2 + $0x34] sm:$0xf]
    %v74 = vld [vmem:[#allocation2 + $0x38] sm:$0xf]
    %v75 = vld [vmem:[#allocation2 + $0x3c] sm:$0xf]
    %v76 = vld [vmem:[#allocation5] sm:$0xf]
    %v77 = vld [vmem:[#allocation5 + $0x4] sm:$0xf]
    %v78 = vld [vmem:[#allocation5 + $0x8] sm:$0xf]
    %v79 = vld [vmem:[#allocation5 + $0xc] sm:$0xf]
    %v80 = vld [vmem:[#allocation5 + $0x10] sm:$0xf]
    %v81 = vld [vmem:[#allocation5 + $0x14] sm:$0xf]
    %v82 = vld [vmem:[#allocation5 + $0x18] sm:$0xf]
    %v83 = vld [vmem:[#allocation5 + $0x1c] sm:$0xf]
    %v84 = vld [vmem:[#allocation5 + $0x20] sm:$0xf]
    %v85 = vld [vmem:[#allocation5 + $0x24] sm:$0xf]
    %v86 = vld [vmem:[#allocation5 + $0x28] sm:$0xf]
    %v87 = vld [vmem:[#allocation5 + $0x2c] sm:$0xf]
    %v88 = vld [vmem:[#allocation5 + $0x30] sm:$0xf]
    %v89 = vld [vmem:[#allocation5 + $0x34] sm:$0xf]
    %v90 = vld [vmem:[#allocation5 + $0x38] sm:$0xf]
    %v91 = vld [vmem:[#allocation5 + $0x3c] sm:$0xf]
    %v92 = vld [vmem:[#allocation7] sm:$0xf]
    %v93 = vld [vmem:[#allocation7 + $0x4] sm:$0xf]
    %v94 = vld [vmem:[#allocation7 + $0x8] sm:$0xf]
    %v95 = vld [vmem:[#allocation7 + $0xc] sm:$0xf]
    %v96 = vld [vmem:[#allocation7 + $0x10] sm:$0xf]
    %v97 = vld [vmem:[#allocation7 + $0x14] sm:$0xf]
    %v98 = vld [vmem:[#allocation7 + $0x18] sm:$0xf]
    %v99 = vld [vmem:[#allocation7 + $0x1c] sm:$0xf]
    %v100 = vld [vmem:[#allocation7 + $0x20] sm:$0xf]
    %v101 = vld [vmem:[#allocation7 + $0x24] sm:$0xf]
    %v102 = vld [vmem:[#allocation7 + $0x28] sm:$0xf]
    %v103 = vld [vmem:[#allocation7 + $0x2c] sm:$0xf]
    %v104 = vld [vmem:[#allocation7 + $0x30] sm:$0xf]
    %v105 = vld [vmem:[#allocation7 + $0x34] sm:$0xf]
    %v106 = vld [vmem:[#allocation7 + $0x38] sm:$0xf]
    %v107 = vld [vmem:[#allocation7 + $0x3c] sm:$0xf]
    %v124 = vunpack.c.l.b16 %v76
    %v125 = vunpack.c.l.b16 %v77
    %v126 = vunpack.c.l.b16 %v78
    %v127 = vunpack.c.l.b16 %v79
    %v128 = vunpack.c.l.b16 %v80
    %v129 = vunpack.c.l.b16 %v81
    %v130 = vunpack.c.l.b16 %v82
    %v131 = vunpack.c.l.b16 %v83
    %v132 = vunpack.c.l.b16 %v84
    %v133 = vunpack.c.l.b16 %v85
    %v134 = vunpack.c.l.b16 %v86
    %v135 = vunpack.c.l.b16 %v87
    %v136 = vunpack.c.l.b16 %v88
    %v137 = vunpack.c.l.b16 %v89
    %v138 = vunpack.c.l.b16 %v90
    %v139 = vunpack.c.l.b16 %v91
    %v140 = vpack.c.b16 %v125, %v124
    %v141 = vpack.c.b16 %v127, %v126
    %v142 = vpack.c.b16 %v129, %v128
    %v143 = vpack.c.b16 %v131, %v130
    %v144 = vpack.c.b16 %v133, %v132
    %v145 = vpack.c.b16 %v135, %v134
    %v146 = vpack.c.b16 %v137, %v136
    %v147 = vpack.c.b16 %v139, %v138
    %v172 = vunpack.c.l.b16 %v92
    %v173 = vunpack.c.l.b16 %v93
    %v174 = vunpack.c.l.b16 %v94
    %v175 = vunpack.c.l.b16 %v95
    %v176 = vunpack.c.l.b16 %v96
    %v177 = vunpack.c.l.b16 %v97
    %v178 = vunpack.c.l.b16 %v98
    %v179 = vunpack.c.l.b16 %v99
    %v180 = vunpack.c.l.b16 %v100
    %v181 = vunpack.c.l.b16 %v101
    %v182 = vunpack.c.l.b16 %v102
    %v183 = vunpack.c.l.b16 %v103
    %v184 = vunpack.c.l.b16 %v104
    %v185 = vunpack.c.l.b16 %v105
    %v186 = vunpack.c.l.b16 %v106
    %v187 = vunpack.c.l.b16 %v107
    %v188 = vpack.c.b16 %v173, %v172
    %v189 = vpack.c.b16 %v175, %v174
    %v190 = vpack.c.b16 %v177, %v176
    %v191 = vpack.c.b16 %v179, %v178
    %v192 = vpack.c.b16 %v181, %v180
    %v193 = vpack.c.b16 %v183, %v182
    %v194 = vpack.c.b16 %v185, %v184
    %v195 = vpack.c.b16 %v187, %v186
    %204 = vmatprep.subr.bf16.mxu0 0
    %205 = vmatpush1.bf16.msra.mxu0 %v188
    %206 = vmatprep.subr.bf16.mxu0 0
    %207 = vmatpush1.bf16.msra.mxu0 %v189
    %208 = vmatprep.subr.bf16.mxu0 0
    %209 = vmatpush1.bf16.msra.mxu0 %v190
    %210 = vmatprep.subr.bf16.mxu0 0
    %211 = vmatpush1.bf16.msra.mxu0 %v191
    %212 = vmatprep.subr.bf16.mxu0 0
    %213 = vmatpush1.bf16.msra.mxu0 %v192
    %214 = vmatprep.subr.bf16.mxu0 0
    %215 = vmatpush1.bf16.msra.mxu0 %v193
    %216 = vmatprep.subr.bf16.mxu0 0
    %217 = vmatpush1.bf16.msra.mxu0 %v194
    %218 = vmatprep.subr.bf16.mxu0 0
    %219 = vmatpush1.bf16.msra.mxu0 %v195
    %220 = vmatprep.subr.bf16.mxu0 0
    %221 = vmatpush1.bf16.msra.mxu0 0
    %222 = vmatprep.subr.bf16.mxu0 0
    %223 = vmatpush1.bf16.msra.mxu0 0
    %224 = vmatprep.subr.bf16.mxu0 0
    %225 = vmatpush1.bf16.msra.mxu0 0
    %226 = vmatprep.subr.bf16.mxu0 0
    %227 = vmatpush1.bf16.msra.mxu0 0
    %228 = vmatprep.subr.bf16.mxu0 0
    %229 = vmatpush1.bf16.msra.mxu0 0
    %230 = vmatprep.subr.bf16.mxu0 0
    %231 = vmatpush1.bf16.msra.mxu0 0
    %232 = vmatprep.subr.bf16.mxu0 0
    %233 = vmatpush1.bf16.msra.mxu0 0
    %234 = vmatprep.subr.bf16.mxu0 0
    %235 = vmatpush1.bf16.msra.mxu0 0
    %236 = vmatprep.mubr.bf16.mxu0 0
    %237 = vmatmul.mubr.bf16.gmra.mrb[0].mxu0 %v140
    %v238 = vpop.f32.mrb[0].mxu0
    %v239 = vadd.f32 0.0, %v238
    %v240 = vpop.f32.mrb[0].mxu0
    %v241 = vpop.f32.mrb[0].mxu0
    %v242 = vadd.f32 0.0, %v241
    %v243 = vpop.f32.mrb[0].mxu0
    %244 = vmatprep.mubr.bf16.mxu0 0
    %245 = vmatmul.mubr.bf16.gmra.mrb[0].mxu0 %v141
    %v246 = vpop.f32.mrb[0].mxu0
    %v247 = vadd.f32 0.0, %v246
    %v248 = vpop.f32.mrb[0].mxu0
    %v249 = vpop.f32.mrb[0].mxu0
    %v250 = vadd.f32 0.0, %v249
    %v251 = vpop.f32.mrb[0].mxu0
    %252 = vmatprep.mubr.bf16.mxu0 0
    %253 = vmatmul.mubr.bf16.gmra.mrb[0].mxu0 %v142
    %v254 = vpop.f32.mrb[0].mxu0
    %v255 = vadd.f32 0.0, %v254
    %v256 = vpop.f32.mrb[0].mxu0
    %v257 = vpop.f32.mrb[0].mxu0
    %v258 = vadd.f32 0.0, %v257
    %v259 = vpop.f32.mrb[0].mxu0
    %260 = vmatprep.mubr.bf16.mxu0 0
    %261 = vmatmul.mubr.bf16.gmra.mrb[0].mxu0 %v143
    %v262 = vpop.f32.mrb[0].mxu0
    %v263 = vadd.f32 0.0, %v262
    %v264 = vpop.f32.mrb[0].mxu0
    %v265 = vpop.f32.mrb[0].mxu0
    %v266 = vadd.f32 0.0, %v265
    %v267 = vpop.f32.mrb[0].mxu0
    %268 = vmatprep.mubr.bf16.mxu0 0
    %269 = vmatmul.mubr.bf16.gmra.mrb[0].mxu0 %v144
    %v270 = vpop.f32.mrb[0].mxu0
    %v271 = vadd.f32 0.0, %v270
    %v272 = vpop.f32.mrb[0].mxu0
    %v273 = vpop.f32.mrb[0].mxu0
    %v274 = vadd.f32 0.0, %v273
    %v275 = vpop.f32.mrb[0].mxu0
    %276 = vmatprep.mubr.bf16.mxu0 0
    %277 = vmatmul.mubr.bf16.gmra.mrb[0].mxu0 %v145
    %v278 = vpop.f32.mrb[0].mxu0
    %v279 = vadd.f32 0.0, %v278
    %v280 = vpop.f32.mrb[0].mxu0
    %v281 = vpop.f32.mrb[0].mxu0
    %v282 = vadd.f32 0.0, %v281
    %v283 = vpop.f32.mrb[0].mxu0
    %284 = vmatprep.mubr.bf16.mxu0 0
    %285 = vmatmul.mubr.bf16.gmra.mrb[0].mxu0 %v146
    %v286 = vpop.f32.mrb[0].mxu0
    %v287 = vadd.f32 0.0, %v286
    %v288 = vpop.f32.mrb[0].mxu0
    %v289 = vpop.f32.mrb[0].mxu0
    %v290 = vadd.f32 0.0, %v289
    %v291 = vpop.f32.mrb[0].mxu0
    %292 = vmatprep.mubr.bf16.mxu0 0
    %293 = vmatmul.mubr.bf16.gmra.mrb[0].mxu0 %v147
    %v294 = vpop.f32.mrb[0].mxu0
    %v295 = vadd.f32 0.0, %v294
    %v296 = vpop.f32.mrb[0].mxu0
    %v297 = vpop.f32.mrb[0].mxu0
    %v298 = vadd.f32 0.0, %v297
    %v299 = vpop.f32.mrb[0].mxu0
    %300 = vdwg.mxu0
    %v301 = vpack.c.bf16 %v242, %v239
    %v302 = vpack.c.bf16 %v250, %v247
    %v303 = vpack.c.bf16 %v258, %v255
    %v304 = vpack.c.bf16 %v266, %v263
    %v305 = vpack.c.bf16 %v274, %v271
    %v306 = vpack.c.bf16 %v282, %v279
    %v307 = vpack.c.bf16 %v290, %v287
    %v308 = vpack.c.bf16 %v298, %v295
    %v309 = vld [vmem:[%s3] sm:$0x1]
    %v311 = vlaneseq
    %v312 = vshrl.u32 %v311, 7
    %v313 = vsub.s32 0, %v312
    %v314 = vrot.slane %v309, %v313
    %v332 = vunpack.c.l.b16 %v60
    %v333 = vunpack.c.l.b16 %v61
    %v334 = vunpack.c.l.b16 %v62
    %v335 = vunpack.c.l.b16 %v63
    %v336 = vunpack.c.l.b16 %v64
    %v337 = vunpack.c.l.b16 %v65
    %v338 = vunpack.c.l.b16 %v66
    %v339 = vunpack.c.l.b16 %v67
    %v340 = vunpack.c.l.b16 %v68
    %v341 = vunpack.c.l.b16 %v69
    %v342 = vunpack.c.l.b16 %v70
    %v343 = vunpack.c.l.b16 %v71
    %v344 = vunpack.c.l.b16 %v72
    %v345 = vunpack.c.l.b16 %v73
    %v346 = vunpack.c.l.b16 %v74
    %v347 = vunpack.c.l.b16 %v75
    %v348 = vpack.c.b16 %v333, %v332
    %v349 = vpack.c.b16 %v335, %v334
    %v350 = vpack.c.b16 %v337, %v336
    %v351 = vpack.c.b16 %v339, %v338
    %v352 = vpack.c.b16 %v341, %v340
    %v353 = vpack.c.b16 %v343, %v342
    %v354 = vpack.c.b16 %v345, %v344
    %v355 = vpack.c.b16 %v347, %v346
    %364 = vmatprep.subr.bf16.mxu0 0
    %365 = vmatpush1.bf16.msra.mxu0 %v301
    %366 = vmatprep.subr.bf16.mxu0 0
    %367 = vmatpush1.bf16.msra.mxu0 %v302
    %368 = vmatprep.subr.bf16.mxu0 0
    %369 = vmatpush1.bf16.msra.mxu0 %v303
    %370 = vmatprep.subr.bf16.mxu0 0
    %371 = vmatpush1.bf16.msra.mxu0 %v304
    %372 = vmatprep.subr.bf16.mxu0 0
    %373 = vmatpush1.bf16.msra.mxu0 %v305
    %374 = vmatprep.subr.bf16.mxu0 0
    %375 = vmatpush1.bf16.msra.mxu0 %v306
    %376 = vmatprep.subr.bf16.mxu0 0
    %377 = vmatpush1.bf16.msra.mxu0 %v307
    %378 = vmatprep.subr.bf16.mxu0 0
    %379 = vmatpush1.bf16.msra.mxu0 %v308
    %380 = vmatprep.subr.bf16.mxu0 0
    %381 = vmatpush1.bf16.msra.mxu0 0
    %382 = vmatprep.subr.bf16.mxu0 0
    %383 = vmatpush1.bf16.msra.mxu0 0
    %384 = vmatprep.subr.bf16.mxu0 0
    %385 = vmatpush1.bf16.msra.mxu0 0
    %386 = vmatprep.subr.bf16.mxu0 0
    %387 = vmatpush1.bf16.msra.mxu0 0
    %388 = vmatprep.subr.bf16.mxu0 0
    %389 = vmatpush1.bf16.msra.mxu0 0
    %390 = vmatprep.subr.bf16.mxu0 0
    %391 = vmatpush1.bf16.msra.mxu0 0
    %392 = vmatprep.subr.bf16.mxu0 0
    %393 = vmatpush1.bf16.msra.mxu0 0
    %394 = vmatprep.subr.bf16.mxu0 0
    %395 = vmatpush1.bf16.msra.mxu0 0
    %396 = vmatprep.mubr.bf16.mxu0 0
    %397 = vmatmul.mubr.bf16.gmra.mrb[0].mxu0 %v348
    %v398 = vpop.f32.mrb[0].mxu0
    %v399 = vadd.f32 %v314, %v398
    %v400 = vpop.f32.mrb[0].mxu0
    %v401 = vpop.f32.mrb[0].mxu0
    %v402 = vadd.f32 %v314, %v401
    %v403 = vpop.f32.mrb[0].mxu0
    %404 = vmatprep.mubr.bf16.mxu0 0
    %405 = vmatmul.mubr.bf16.gmra.mrb[0].mxu0 %v349
    %v406 = vpop.f32.mrb[0].mxu0
    %v407 = vadd.f32 %v314, %v406
    %v408 = vpop.f32.mrb[0].mxu0
    %v409 = vpop.f32.mrb[0].mxu0
    %v410 = vadd.f32 %v314, %v409
    %v411 = vpop.f32.mrb[0].mxu0
    %412 = vmatprep.mubr.bf16.mxu0 0
    %413 = vmatmul.mubr.bf16.gmra.mrb[0].mxu0 %v350
    %v414 = vpop.f32.mrb[0].mxu0
    %v415 = vadd.f32 %v314, %v414
    %v416 = vpop.f32.mrb[0].mxu0
    %v417 = vpop.f32.mrb[0].mxu0
    %v418 = vadd.f32 %v314, %v417
    %v419 = vpop.f32.mrb[0].mxu0
    %420 = vmatprep.mubr.bf16.mxu0 0
    %421 = vmatmul.mubr.bf16.gmra.mrb[0].mxu0 %v351
    %v422 = vpop.f32.mrb[0].mxu0
    %v423 = vadd.f32 %v314, %v422
    %v424 = vpop.f32.mrb[0].mxu0
    %v425 = vpop.f32.mrb[0].mxu0
    %v426 = vadd.f32 %v314, %v425
    %v427 = vpop.f32.mrb[0].mxu0
    %428 = vmatprep.mubr.bf16.mxu0 0
    %429 = vmatmul.mubr.bf16.gmra.mrb[0].mxu0 %v352
    %v430 = vpop.f32.mrb[0].mxu0
    %v431 = vadd.f32 %v314, %v430
    %v432 = vpop.f32.mrb[0].mxu0
    %v433 = vpop.f32.mrb[0].mxu0
    %v434 = vadd.f32 %v314, %v433
    %v435 = vpop.f32.mrb[0].mxu0
    %436 = vmatprep.mubr.bf16.mxu0 0
    %437 = vmatmul.mubr.bf16.gmra.mrb[0].mxu0 %v353
    %v438 = vpop.f32.mrb[0].mxu0
    %v439 = vadd.f32 %v314, %v438
    %v440 = vpop.f32.mrb[0].mxu0
    %v441 = vpop.f32.mrb[0].mxu0
    %v442 = vadd.f32 %v314, %v441
    %v443 = vpop.f32.mrb[0].mxu0
    %444 = vmatprep.mubr.bf16.mxu0 0
    %445 = vmatmul.mubr.bf16.gmra.mrb[0].mxu0 %v354
    %v446 = vpop.f32.mrb[0].mxu0
    %v447 = vadd.f32 %v314, %v446
    %v448 = vpop.f32.mrb[0].mxu0
    %v449 = vpop.f32.mrb[0].mxu0
    %v450 = vadd.f32 %v314, %v449
    %v451 = vpop.f32.mrb[0].mxu0
    %452 = vmatprep.mubr.bf16.mxu0 0
    %453 = vmatmul.mubr.bf16.gmra.mrb[0].mxu0 %v355
    %v454 = vpop.f32.mrb[0].mxu0
    %v455 = vadd.f32 %v314, %v454
    %v456 = vpop.f32.mrb[0].mxu0
    %v457 = vpop.f32.mrb[0].mxu0
    %v458 = vadd.f32 %v314, %v457
    %v459 = vpop.f32.mrb[0].mxu0
    %460 = vdwg.mxu0
    %v461 = vmax.f32 %v399, 0.0
    %v462 = vmax.f32 %v402, 0.0
    %v463 = vmax.f32 %v407, 0.0
    %v464 = vmax.f32 %v410, 0.0
    %v465 = vmax.f32 %v415, 0.0
    %v466 = vmax.f32 %v418, 0.0
    %v467 = vmax.f32 %v423, 0.0
    %v468 = vmax.f32 %v426, 0.0
    %v469 = vmax.f32 %v431, 0.0
    %v470 = vmax.f32 %v434, 0.0
    %v471 = vmax.f32 %v439, 0.0
    %v472 = vmax.f32 %v442, 0.0
    %v473 = vmax.f32 %v447, 0.0
    %v474 = vmax.f32 %v450, 0.0
    %v475 = vmax.f32 %v455, 0.0
    %v476 = vmax.f32 %v458, 0.0
    %v477 = vpack.c.bf16 %v462, %v461
    %v478 = vpack.c.bf16 %v464, %v463
    %v479 = vpack.c.bf16 %v466, %v465
    %v480 = vpack.c.bf16 %v468, %v467
    %v481 = vpack.c.bf16 %v470, %v469
    %v482 = vpack.c.bf16 %v472, %v471
    %v483 = vpack.c.bf16 %v474, %v473
    %v484 = vpack.c.bf16 %v476, %v475
    %s485 = scalar_lea.vmem [#allocation7], 64
    %v486 = vld [vmem:[%s485] sm:$0xf]
    %v487 = vld [vmem:[%s485 + $0x4] sm:$0xf]
    %v488 = vld [vmem:[%s485 + $0x8] sm:$0xf]
    %v489 = vld [vmem:[%s485 + $0xc] sm:$0xf]
    %v490 = vld [vmem:[%s485 + $0x10] sm:$0xf]
    %v491 = vld [vmem:[%s485 + $0x14] sm:$0xf]
    %v492 = vld [vmem:[%s485 + $0x18] sm:$0xf]
    %v493 = vld [vmem:[%s485 + $0x1c] sm:$0xf]
    %v494 = vld [vmem:[%s485 + $0x20] sm:$0xf]
    %v495 = vld [vmem:[%s485 + $0x24] sm:$0xf]
    %v496 = vld [vmem:[%s485 + $0x28] sm:$0xf]
    %v497 = vld [vmem:[%s485 + $0x2c] sm:$0xf]
    %v498 = vld [vmem:[%s485 + $0x30] sm:$0xf]
    %v499 = vld [vmem:[%s485 + $0x34] sm:$0xf]
    %v500 = vld [vmem:[%s485 + $0x38] sm:$0xf]
    %v501 = vld [vmem:[%s485 + $0x3c] sm:$0xf]
    %v518 = vunpack.c.l.b16 %v486
    %v519 = vunpack.c.l.b16 %v487
    %v520 = vunpack.c.l.b16 %v488
    %v521 = vunpack.c.l.b16 %v489
    %v522 = vunpack.c.l.b16 %v490
    %v523 = vunpack.c.l.b16 %v491
    %v524 = vunpack.c.l.b16 %v492
    %v525 = vunpack.c.l.b16 %v493
    %v526 = vunpack.c.l.b16 %v494
    %v527 = vunpack.c.l.b16 %v495
    %v528 = vunpack.c.l.b16 %v496
    %v529 = vunpack.c.l.b16 %v497
    %v530 = vunpack.c.l.b16 %v498
    %v531 = vunpack.c.l.b16 %v499
    %v532 = vunpack.c.l.b16 %v500
    %v533 = vunpack.c.l.b16 %v501
    %v534 = vpack.c.b16 %v519, %v518
    %v535 = vpack.c.b16 %v521, %v520
    %v536 = vpack.c.b16 %v523, %v522
    %v537 = vpack.c.b16 %v525, %v524
    %v538 = vpack.c.b16 %v527, %v526
    %v539 = vpack.c.b16 %v529, %v528
    %v540 = vpack.c.b16 %v531, %v530
    %v541 = vpack.c.b16 %v533, %v532
    %550 = vmatprep.subr.bf16.mxu0 0
    %551 = vmatpush1.bf16.msra.mxu0 %v534
    %552 = vmatprep.subr.bf16.mxu0 0
    %553 = vmatpush1.bf16.msra.mxu0 %v535
    %554 = vmatprep.subr.bf16.mxu0 0
    %555 = vmatpush1.bf16.msra.mxu0 %v536
    %556 = vmatprep.subr.bf16.mxu0 0
    %557 = vmatpush1.bf16.msra.mxu0 %v537
    %558 = vmatprep.subr.bf16.mxu0 0
    %559 = vmatpush1.bf16.msra.mxu0 %v538
    %560 = vmatprep.subr.bf16.mxu0 0
    %561 = vmatpush1.bf16.msra.mxu0 %v539
    %562 = vmatprep.subr.bf16.mxu0 0
    %563 = vmatpush1.bf16.msra.mxu0 %v540
    %564 = vmatprep.subr.bf16.mxu0 0
    %565 = vmatpush1.bf16.msra.mxu0 %v541
    %566 = vmatprep.subr.bf16.mxu0 0
    %567 = vmatpush1.bf16.msra.mxu0 0
    %568 = vmatprep.subr.bf16.mxu0 0
    %569 = vmatpush1.bf16.msra.mxu0 0
    %570 = vmatprep.subr.bf16.mxu0 0
    %571 = vmatpush1.bf16.msra.mxu0 0
    %572 = vmatprep.subr.bf16.mxu0 0
    %573 = vmatpush1.bf16.msra.mxu0 0
    %574 = vmatprep.subr.bf16.mxu0 0
    %575 = vmatpush1.bf16.msra.mxu0 0
    %576 = vmatprep.subr.bf16.mxu0 0
    %577 = vmatpush1.bf16.msra.mxu0 0
    %578 = vmatprep.subr.bf16.mxu0 0
    %579 = vmatpush1.bf16.msra.mxu0 0
    %580 = vmatprep.subr.bf16.mxu0 0
    %581 = vmatpush1.bf16.msra.mxu0 0
    %582 = vmatprep.mubr.bf16.mxu0 0
    %583 = vmatmul.mubr.bf16.gmra.mrb[0].mxu0 %v477
    %v584 = vpop.f32.mrb[0].mxu0
    %v585 = vadd.f32 0.0, %v584
    %v586 = vpop.f32.mrb[0].mxu0
    %v587 = vpop.f32.mrb[0].mxu0
    %v588 = vadd.f32 0.0, %v587
    %v589 = vpop.f32.mrb[0].mxu0
    %590 = vmatprep.mubr.bf16.mxu0 0
    %591 = vmatmul.mubr.bf16.gmra.mrb[0].mxu0 %v478
    %v592 = vpop.f32.mrb[0].mxu0
    %v593 = vadd.f32 0.0, %v592
    %v594 = vpop.f32.mrb[0].mxu0
    %v595 = vpop.f32.mrb[0].mxu0
    %v596 = vadd.f32 0.0, %v595
    %v597 = vpop.f32.mrb[0].mxu0
    %598 = vmatprep.mubr.bf16.mxu0 0
    %599 = vmatmul.mubr.bf16.gmra.mrb[0].mxu0 %v479
    %v600 = vpop.f32.mrb[0].mxu0
    %v601 = vadd.f32 0.0, %v600
    %v602 = vpop.f32.mrb[0].mxu0
    %v603 = vpop.f32.mrb[0].mxu0
    %v604 = vadd.f32 0.0, %v603
    %v605 = vpop.f32.mrb[0].mxu0
    %606 = vmatprep.mubr.bf16.mxu0 0
    %607 = vmatmul.mubr.bf16.gmra.mrb[0].mxu0 %v480
    %v608 = vpop.f32.mrb[0].mxu0
    %v609 = vadd.f32 0.0, %v608
    %v610 = vpop.f32.mrb[0].mxu0
    %v611 = vpop.f32.mrb[0].mxu0
    %v612 = vadd.f32 0.0, %v611
    %v613 = vpop.f32.mrb[0].mxu0
    %614 = vmatprep.mubr.bf16.mxu0 0
    %615 = vmatmul.mubr.bf16.gmra.mrb[0].mxu0 %v481
    %v616 = vpop.f32.mrb[0].mxu0
    %v617 = vadd.f32 0.0, %v616
    %v618 = vpop.f32.mrb[0].mxu0
    %v619 = vpop.f32.mrb[0].mxu0
    %v620 = vadd.f32 0.0, %v619
    %v621 = vpop.f32.mrb[0].mxu0
    %622 = vmatprep.mubr.bf16.mxu0 0
    %623 = vmatmul.mubr.bf16.gmra.mrb[0].mxu0 %v482
    %v624 = vpop.f32.mrb[0].mxu0
    %v625 = vadd.f32 0.0, %v624
    %v626 = vpop.f32.mrb[0].mxu0
    %v627 = vpop.f32.mrb[0].mxu0
    %v628 = vadd.f32 0.0, %v627
    %v629 = vpop.f32.mrb[0].mxu0
    %630 = vmatprep.mubr.bf16.mxu0 0
    %631 = vmatmul.mubr.bf16.gmra.mrb[0].mxu0 %v483
    %v632 = vpop.f32.mrb[0].mxu0
    %v633 = vadd.f32 0.0, %v632
    %v634 = vpop.f32.mrb[0].mxu0
    %v635 = vpop.f32.mrb[0].mxu0
    %v636 = vadd.f32 0.0, %v635
    %v637 = vpop.f32.mrb[0].mxu0
    %638 = vmatprep.mubr.bf16.mxu0 0
    %639 = vmatmul.mubr.bf16.gmra.mrb[0].mxu0 %v484
    %v640 = vpop.f32.mrb[0].mxu0
    %v641 = vadd.f32 0.0, %v640
    %v642 = vpop.f32.mrb[0].mxu0
    %v643 = vpop.f32.mrb[0].mxu0
    %v644 = vadd.f32 0.0, %v643
    %v645 = vpop.f32.mrb[0].mxu0
    %646 = vdwg.mxu0
    %v647 = vpack.c.bf16 %v588, %v585
    %v648 = vpack.c.bf16 %v596, %v593
    %v649 = vpack.c.bf16 %v604, %v601
    %v650 = vpack.c.bf16 %v612, %v609
    %v651 = vpack.c.bf16 %v620, %v617
    %v652 = vpack.c.bf16 %v628, %v625
    %v653 = vpack.c.bf16 %v636, %v633
    %v654 = vpack.c.bf16 %v644, %v641
    %s655 = scalar_lea.vmem %s3, 1
    %v656 = vld [vmem:[%s655] sm:$0x1]
    %v658 = vlaneseq
    %v659 = vshrl.u32 %v658, 7
    %v660 = vsub.s32 0, %v659
    %v661 = vrot.slane %v656, %v660
    %663 = vmatprep.subr.bf16.mxu0 0
    %664 = vmatpush1.bf16.msra.mxu0 %v647
    %665 = vmatprep.subr.bf16.mxu0 0
    %666 = vmatpush1.bf16.msra.mxu0 %v648
    %667 = vmatprep.subr.bf16.mxu0 0
    %668 = vmatpush1.bf16.msra.mxu0 %v649
    %669 = vmatprep.subr.bf16.mxu0 0
    %670 = vmatpush1.bf16.msra.mxu0 %v650
    %671 = vmatprep.subr.bf16.mxu0 0
    %672 = vmatpush1.bf16.msra.mxu0 %v651
    %673 = vmatprep.subr.bf16.mxu0 0
    %674 = vmatpush1.bf16.msra.mxu0 %v652
    %675 = vmatprep.subr.bf16.mxu0 0
    %676 = vmatpush1.bf16.msra.mxu0 %v653
    %677 = vmatprep.subr.bf16.mxu0 0
    %678 = vmatpush1.bf16.msra.mxu0 %v654
    %679 = vmatprep.subr.bf16.mxu0 0
    %680 = vmatpush1.bf16.msra.mxu0 0
    %681 = vmatprep.subr.bf16.mxu0 0
    %682 = vmatpush1.bf16.msra.mxu0 0
    %683 = vmatprep.subr.bf16.mxu0 0
    %684 = vmatpush1.bf16.msra.mxu0 0
    %685 = vmatprep.subr.bf16.mxu0 0
    %686 = vmatpush1.bf16.msra.mxu0 0
    %687 = vmatprep.subr.bf16.mxu0 0
    %688 = vmatpush1.bf16.msra.mxu0 0
    %689 = vmatprep.subr.bf16.mxu0 0
    %690 = vmatpush1.bf16.msra.mxu0 0
    %691 = vmatprep.subr.bf16.mxu0 0
    %692 = vmatpush1.bf16.msra.mxu0 0
    %693 = vmatprep.subr.bf16.mxu0 0
    %694 = vmatpush1.bf16.msra.mxu0 0
    %695 = vmatprep.mubr.bf16.mxu0 0
    %696 = vmatmul.mubr.bf16.gmra.mrb[0].mxu0 %v348
    %v697 = vpop.f32.mrb[0].mxu0
    %v698 = vadd.f32 %v661, %v697
    %v699 = vpop.f32.mrb[0].mxu0
    %v700 = vpop.f32.mrb[0].mxu0
    %v701 = vadd.f32 %v661, %v700
    %v702 = vpop.f32.mrb[0].mxu0
    %703 = vmatprep.mubr.bf16.mxu0 0
    %704 = vmatmul.mubr.bf16.gmra.mrb[0].mxu0 %v349
    %v705 = vpop.f32.mrb[0].mxu0
    %v706 = vadd.f32 %v661, %v705
    %v707 = vpop.f32.mrb[0].mxu0
    %v708 = vpop.f32.mrb[0].mxu0
    %v709 = vadd.f32 %v661, %v708
    %v710 = vpop.f32.mrb[0].mxu0
    %711 = vmatprep.mubr.bf16.mxu0 0
    %712 = vmatmul.mubr.bf16.gmra.mrb[0].mxu0 %v350
    %v713 = vpop.f32.mrb[0].mxu0
    %v714 = vadd.f32 %v661, %v713
    %v715 = vpop.f32.mrb[0].mxu0
    %v716 = vpop.f32.mrb[0].mxu0
    %v717 = vadd.f32 %v661, %v716
    %v718 = vpop.f32.mrb[0].mxu0
    %719 = vmatprep.mubr.bf16.mxu0 0
    %720 = vmatmul.mubr.bf16.gmra.mrb[0].mxu0 %v351
    %v721 = vpop.f32.mrb[0].mxu0
    %v722 = vadd.f32 %v661, %v721
    %v723 = vpop.f32.mrb[0].mxu0
    %v724 = vpop.f32.mrb[0].mxu0
    %v725 = vadd.f32 %v661, %v724
    %v726 = vpop.f32.mrb[0].mxu0
    %727 = vmatprep.mubr.bf16.mxu0 0
    %728 = vmatmul.mubr.bf16.gmra.mrb[0].mxu0 %v352
    %v729 = vpop.f32.mrb[0].mxu0
    %v730 = vadd.f32 %v661, %v729
    %v731 = vpop.f32.mrb[0].mxu0
    %v732 = vpop.f32.mrb[0].mxu0
    %v733 = vadd.f32 %v661, %v732
    %v734 = vpop.f32.mrb[0].mxu0
    %735 = vmatprep.mubr.bf16.mxu0 0
    %736 = vmatmul.mubr.bf16.gmra.mrb[0].mxu0 %v353
    %v737 = vpop.f32.mrb[0].mxu0
    %v738 = vadd.f32 %v661, %v737
    %v739 = vpop.f32.mrb[0].mxu0
    %v740 = vpop.f32.mrb[0].mxu0
    %v741 = vadd.f32 %v661, %v740
    %v742 = vpop.f32.mrb[0].mxu0
    %743 = vmatprep.mubr.bf16.mxu0 0
    %744 = vmatmul.mubr.bf16.gmra.mrb[0].mxu0 %v354
    %v745 = vpop.f32.mrb[0].mxu0
    %v746 = vadd.f32 %v661, %v745
    %v747 = vpop.f32.mrb[0].mxu0
    %v748 = vpop.f32.mrb[0].mxu0
    %v749 = vadd.f32 %v661, %v748
    %v750 = vpop.f32.mrb[0].mxu0
    %751 = vmatprep.mubr.bf16.mxu0 0
    %752 = vmatmul.mubr.bf16.gmra.mrb[0].mxu0 %v355
    %v753 = vpop.f32.mrb[0].mxu0
    %v754 = vadd.f32 %v661, %v753
    %v755 = vpop.f32.mrb[0].mxu0
    %v756 = vpop.f32.mrb[0].mxu0
    %v757 = vadd.f32 %v661, %v756
    %v758 = vpop.f32.mrb[0].mxu0
    %759 = vdwg.mxu0
    %v760 = vmax.f32 %v698, 0.0
    %v761 = vmax.f32 %v701, 0.0
    %v762 = vmax.f32 %v706, 0.0
    %v763 = vmax.f32 %v709, 0.0
    %v764 = vmax.f32 %v714, 0.0
    %v765 = vmax.f32 %v717, 0.0
    %v766 = vmax.f32 %v722, 0.0
    %v767 = vmax.f32 %v725, 0.0
    %v768 = vmax.f32 %v730, 0.0
    %v769 = vmax.f32 %v733, 0.0
    %v770 = vmax.f32 %v738, 0.0
    %v771 = vmax.f32 %v741, 0.0
    %v772 = vmax.f32 %v746, 0.0
    %v773 = vmax.f32 %v749, 0.0
    %v774 = vmax.f32 %v754, 0.0
    %v775 = vmax.f32 %v757, 0.0
    %v776 = vpack.c.bf16 %v761, %v760
    %v777 = vpack.c.bf16 %v763, %v762
    %v778 = vpack.c.bf16 %v765, %v764
    %v779 = vpack.c.bf16 %v767, %v766
    %v780 = vpack.c.bf16 %v769, %v768
    %v781 = vpack.c.bf16 %v771, %v770
    %v782 = vpack.c.bf16 %v773, %v772
    %v783 = vpack.c.bf16 %v775, %v774
    %s784 = scalar_lea.vmem [#allocation7], 128
    %v785 = vld [vmem:[%s784] sm:$0xf]
    %v786 = vld [vmem:[%s784 + $0x4] sm:$0xf]
    %v787 = vld [vmem:[%s784 + $0x8] sm:$0xf]
    %v788 = vld [vmem:[%s784 + $0xc] sm:$0xf]
    %v789 = vld [vmem:[%s784 + $0x10] sm:$0xf]
    %v790 = vld [vmem:[%s784 + $0x14] sm:$0xf]
    %v791 = vld [vmem:[%s784 + $0x18] sm:$0xf]
    %v792 = vld [vmem:[%s784 + $0x1c] sm:$0xf]
    %v793 = vld [vmem:[%s784 + $0x20] sm:$0xf]
    %v794 = vld [vmem:[%s784 + $0x24] sm:$0xf]
    %v795 = vld [vmem:[%s784 + $0x28] sm:$0xf]
    %v796 = vld [vmem:[%s784 + $0x2c] sm:$0xf]
    %v797 = vld [vmem:[%s784 + $0x30] sm:$0xf]
    %v798 = vld [vmem:[%s784 + $0x34] sm:$0xf]
    %v799 = vld [vmem:[%s784 + $0x38] sm:$0xf]
    %v800 = vld [vmem:[%s784 + $0x3c] sm:$0xf]
    %v817 = vunpack.c.l.b16 %v785
    %v818 = vunpack.c.l.b16 %v786
    %v819 = vunpack.c.l.b16 %v787
    %v820 = vunpack.c.l.b16 %v788
    %v821 = vunpack.c.l.b16 %v789
    %v822 = vunpack.c.l.b16 %v790
    %v823 = vunpack.c.l.b16 %v791
    %v824 = vunpack.c.l.b16 %v792
    %v825 = vunpack.c.l.b16 %v793
    %v826 = vunpack.c.l.b16 %v794
    %v827 = vunpack.c.l.b16 %v795
    %v828 = vunpack.c.l.b16 %v796
    %v829 = vunpack.c.l.b16 %v797
    %v830 = vunpack.c.l.b16 %v798
    %v831 = vunpack.c.l.b16 %v799
    %v832 = vunpack.c.l.b16 %v800
    %v833 = vpack.c.b16 %v818, %v817
    %v834 = vpack.c.b16 %v820, %v819
    %v835 = vpack.c.b16 %v822, %v821
    %v836 = vpack.c.b16 %v824, %v823
    %v837 = vpack.c.b16 %v826, %v825
    %v838 = vpack.c.b16 %v828, %v827
    %v839 = vpack.c.b16 %v830, %v829
    %v840 = vpack.c.b16 %v832, %v831
    %849 = vmatprep.subr.bf16.mxu0 0
    %850 = vmatpush1.bf16.msra.mxu0 %v833
    %851 = vmatprep.subr.bf16.mxu0 0
    %852 = vmatpush1.bf16.msra.mxu0 %v834
    %853 = vmatprep.subr.bf16.mxu0 0
    %854 = vmatpush1.bf16.msra.mxu0 %v835
    %855 = vmatprep.subr.bf16.mxu0 0
    %856 = vmatpush1.bf16.msra.mxu0 %v836
    %857 = vmatprep.subr.bf16.mxu0 0
    %858 = vmatpush1.bf16.msra.mxu0 %v837
    %859 = vmatprep.subr.bf16.mxu0 0
    %860 = vmatpush1.bf16.msra.mxu0 %v838
    %861 = vmatprep.subr.bf16.mxu0 0
    %862 = vmatpush1.bf16.msra.mxu0 %v839
    %863 = vmatprep.subr.bf16.mxu0 0
    %864 = vmatpush1.bf16.msra.mxu0 %v840
    %865 = vmatprep.subr.bf16.mxu0 0
    %866 = vmatpush1.bf16.msra.mxu0 0
    %867 = vmatprep.subr.bf16.mxu0 0
    %868 = vmatpush1.bf16.msra.mxu0 0
    %869 = vmatprep.subr.bf16.mxu0 0
    %870 = vmatpush1.bf16.msra.mxu0 0
    %871 = vmatprep.subr.bf16.mxu0 0
    %872 = vmatpush1.bf16.msra.mxu0 0
    %873 = vmatprep.subr.bf16.mxu0 0
    %874 = vmatpush1.bf16.msra.mxu0 0
    %875 = vmatprep.subr.bf16.mxu0 0
    %876 = vmatpush1.bf16.msra.mxu0 0
    %877 = vmatprep.subr.bf16.mxu0 0
    %878 = vmatpush1.bf16.msra.mxu0 0
    %879 = vmatprep.subr.bf16.mxu0 0
    %880 = vmatpush1.bf16.msra.mxu0 0
    %881 = vmatprep.mubr.bf16.mxu0 0
    %882 = vmatmul.mubr.bf16.gmra.mrb[0].mxu0 %v776
    %v883 = vpop.f32.mrb[0].mxu0
    %v884 = vadd.f32 0.0, %v883
    %v885 = vpop.f32.mrb[0].mxu0
    %v886 = vpop.f32.mrb[0].mxu0
    %v887 = vadd.f32 0.0, %v886
    %v888 = vpop.f32.mrb[0].mxu0
    %889 = vmatprep.mubr.bf16.mxu0 0
    %890 = vmatmul.mubr.bf16.gmra.mrb[0].mxu0 %v777
    %v891 = vpop.f32.mrb[0].mxu0
    %v892 = vadd.f32 0.0, %v891
    %v893 = vpop.f32.mrb[0].mxu0
    %v894 = vpop.f32.mrb[0].mxu0
    %v895 = vadd.f32 0.0, %v894
    %v896 = vpop.f32.mrb[0].mxu0
    %897 = vmatprep.mubr.bf16.mxu0 0
    %898 = vmatmul.mubr.bf16.gmra.mrb[0].mxu0 %v778
    %v899 = vpop.f32.mrb[0].mxu0
    %v900 = vadd.f32 0.0, %v899
    %v901 = vpop.f32.mrb[0].mxu0
    %v902 = vpop.f32.mrb[0].mxu0
    %v903 = vadd.f32 0.0, %v902
    %v904 = vpop.f32.mrb[0].mxu0
    %905 = vmatprep.mubr.bf16.mxu0 0
    %906 = vmatmul.mubr.bf16.gmra.mrb[0].mxu0 %v779
    %v907 = vpop.f32.mrb[0].mxu0
    %v908 = vadd.f32 0.0, %v907
    %v909 = vpop.f32.mrb[0].mxu0
    %v910 = vpop.f32.mrb[0].mxu0
    %v911 = vadd.f32 0.0, %v910
    %v912 = vpop.f32.mrb[0].mxu0
    %913 = vmatprep.mubr.bf16.mxu0 0
    %914 = vmatmul.mubr.bf16.gmra.mrb[0].mxu0 %v780
    %v915 = vpop.f32.mrb[0].mxu0
    %v916 = vadd.f32 0.0, %v915
    %v917 = vpop.f32.mrb[0].mxu0
    %v918 = vpop.f32.mrb[0].mxu0
    %v919 = vadd.f32 0.0, %v918
    %v920 = vpop.f32.mrb[0].mxu0
    %921 = vmatprep.mubr.bf16.mxu0 0
    %922 = vmatmul.mubr.bf16.gmra.mrb[0].mxu0 %v781
    %v923 = vpop.f32.mrb[0].mxu0
    %v924 = vadd.f32 0.0, %v923
    %v925 = vpop.f32.mrb[0].mxu0
    %v926 = vpop.f32.mrb[0].mxu0
    %v927 = vadd.f32 0.0, %v926
    %v928 = vpop.f32.mrb[0].mxu0
    %929 = vmatprep.mubr.bf16.mxu0 0
    %930 = vmatmul.mubr.bf16.gmra.mrb[0].mxu0 %v782
    %v931 = vpop.f32.mrb[0].mxu0
    %v932 = vadd.f32 0.0, %v931
    %v933 = vpop.f32.mrb[0].mxu0
    %v934 = vpop.f32.mrb[0].mxu0
    %v935 = vadd.f32 0.0, %v934
    %v936 = vpop.f32.mrb[0].mxu0
    %937 = vmatprep.mubr.bf16.mxu0 0
    %938 = vmatmul.mubr.bf16.gmra.mrb[0].mxu0 %v783
    %v939 = vpop.f32.mrb[0].mxu0
    %v940 = vadd.f32 0.0, %v939
    %v941 = vpop.f32.mrb[0].mxu0
    %v942 = vpop.f32.mrb[0].mxu0
    %v943 = vadd.f32 0.0, %v942
    %v944 = vpop.f32.mrb[0].mxu0
    %945 = vdwg.mxu0
    %v946 = vpack.c.bf16 %v887, %v884
    %v947 = vpack.c.bf16 %v895, %v892
    %v948 = vpack.c.bf16 %v903, %v900
    %v949 = vpack.c.bf16 %v911, %v908
    %v950 = vpack.c.bf16 %v919, %v916
    %v951 = vpack.c.bf16 %v927, %v924
    %v952 = vpack.c.bf16 %v935, %v932
    %v953 = vpack.c.bf16 %v943, %v940
    %s954 = scalar_lea.vmem %s3, 2
    %v955 = vld [vmem:[%s954] sm:$0x1]
    %v957 = vlaneseq
    %v958 = vshrl.u32 %v957, 7
    %v959 = vsub.s32 0, %v958
    %v960 = vrot.slane %v955, %v959
    %962 = vmatprep.subr.bf16.mxu0 0
    %963 = vmatpush1.bf16.msra.mxu0 %v946
    %964 = vmatprep.subr.bf16.mxu0 0
    %965 = vmatpush1.bf16.msra.mxu0 %v947
    %966 = vmatprep.subr.bf16.mxu0 0
    %967 = vmatpush1.bf16.msra.mxu0 %v948
    %968 = vmatprep.subr.bf16.mxu0 0
    %969 = vmatpush1.bf16.msra.mxu0 %v949
    %970 = vmatprep.subr.bf16.mxu0 0
    %971 = vmatpush1.bf16.msra.mxu0 %v950
    %972 = vmatprep.subr.bf16.mxu0 0
    %973 = vmatpush1.bf16.msra.mxu0 %v951
    %974 = vmatprep.subr.bf16.mxu0 0
    %975 = vmatpush1.bf16.msra.mxu0 %v952
    %976 = vmatprep.subr.bf16.mxu0 0
    %977 = vmatpush1.bf16.msra.mxu0 %v953
    %978 = vmatprep.subr.bf16.mxu0 0
    %979 = vmatpush1.bf16.msra.mxu0 0
    %980 = vmatprep.subr.bf16.mxu0 0
    %981 = vmatpush1.bf16.msra.mxu0 0
    %982 = vmatprep.subr.bf16.mxu0 0
    %983 = vmatpush1.bf16.msra.mxu0 0
    %984 = vmatprep.subr.bf16.mxu0 0
    %985 = vmatpush1.bf16.msra.mxu0 0
    %986 = vmatprep.subr.bf16.mxu0 0
    %987 = vmatpush1.bf16.msra.mxu0 0
    %988 = vmatprep.subr.bf16.mxu0 0
    %989 = vmatpush1.bf16.msra.mxu0 0
    %990 = vmatprep.subr.bf16.mxu0 0
    %991 = vmatpush1.bf16.msra.mxu0 0
    %992 = vmatprep.subr.bf16.mxu0 0
    %993 = vmatpush1.bf16.msra.mxu0 0
    %994 = vmatprep.mubr.bf16.mxu0 0
    %995 = vmatmul.mubr.bf16.gmra.mrb[0].mxu0 %v348
    %v996 = vpop.f32.mrb[0].mxu0
    %v997 = vadd.f32 %v960, %v996
    %v998 = vpop.f32.mrb[0].mxu0
    %v999 = vpop.f32.mrb[0].mxu0
    %v1000 = vadd.f32 %v960, %v999
    %v1001 = vpop.f32.mrb[0].mxu0
    %1002 = vmatprep.mubr.bf16.mxu0 0
    %1003 = vmatmul.mubr.bf16.gmra.mrb[0].mxu0 %v349
    %v1004 = vpop.f32.mrb[0].mxu0
    %v1005 = vadd.f32 %v960, %v1004
    %v1006 = vpop.f32.mrb[0].mxu0
    %v1007 = vpop.f32.mrb[0].mxu0
    %v1008 = vadd.f32 %v960, %v1007
    %v1009 = vpop.f32.mrb[0].mxu0
    %1010 = vmatprep.mubr.bf16.mxu0 0
    %1011 = vmatmul.mubr.bf16.gmra.mrb[0].mxu0 %v350
    %v1012 = vpop.f32.mrb[0].mxu0
    %v1013 = vadd.f32 %v960, %v1012
    %v1014 = vpop.f32.mrb[0].mxu0
    %v1015 = vpop.f32.mrb[0].mxu0
    %v1016 = vadd.f32 %v960, %v1015
    %v1017 = vpop.f32.mrb[0].mxu0
    %1018 = vmatprep.mubr.bf16.mxu0 0
    %1019 = vmatmul.mubr.bf16.gmra.mrb[0].mxu0 %v351
    %v1020 = vpop.f32.mrb[0].mxu0
    %v1021 = vadd.f32 %v960, %v1020
    %v1022 = vpop.f32.mrb[0].mxu0
    %v1023 = vpop.f32.mrb[0].mxu0
    %v1024 = vadd.f32 %v960, %v1023
    %v1025 = vpop.f32.mrb[0].mxu0
    %1026 = vmatprep.mubr.bf16.mxu0 0
    %1027 = vmatmul.mubr.bf16.gmra.mrb[0].mxu0 %v352
    %v1028 = vpop.f32.mrb[0].mxu0
    %v1029 = vadd.f32 %v960, %v1028
    %v1030 = vpop.f32.mrb[0].mxu0
    %v1031 = vpop.f32.mrb[0].mxu0
    %v1032 = vadd.f32 %v960, %v1031
    %v1033 = vpop.f32.mrb[0].mxu0
    %1034 = vmatprep.mubr.bf16.mxu0 0
    %1035 = vmatmul.mubr.bf16.gmra.mrb[0].mxu0 %v353
    %v1036 = vpop.f32.mrb[0].mxu0
    %v1037 = vadd.f32 %v960, %v1036
    %v1038 = vpop.f32.mrb[0].mxu0
    %v1039 = vpop.f32.mrb[0].mxu0
    %v1040 = vadd.f32 %v960, %v1039
    %v1041 = vpop.f32.mrb[0].mxu0
    %1042 = vmatprep.mubr.bf16.mxu0 0
    %1043 = vmatmul.mubr.bf16.gmra.mrb[0].mxu0 %v354
    %v1044 = vpop.f32.mrb[0].mxu0
    %v1045 = vadd.f32 %v960, %v1044
    %v1046 = vpop.f32.mrb[0].mxu0
    %v1047 = vpop.f32.mrb[0].mxu0
    %v1048 = vadd.f32 %v960, %v1047
    %v1049 = vpop.f32.mrb[0].mxu0
    %1050 = vmatprep.mubr.bf16.mxu0 0
    %1051 = vmatmul.mubr.bf16.gmra.mrb[0].mxu0 %v355
    %v1052 = vpop.f32.mrb[0].mxu0
    %v1053 = vadd.f32 %v960, %v1052
    %v1054 = vpop.f32.mrb[0].mxu0
    %v1055 = vpop.f32.mrb[0].mxu0
    %v1056 = vadd.f32 %v960, %v1055
    %v1057 = vpop.f32.mrb[0].mxu0
    %1058 = vdwg.mxu0
    %1059 = vst [vmem:[#allocation8] sm:$0xff] %v997
    %1060 = vst [vmem:[#allocation8 + $0x8] sm:$0xff] %v1000
    %1061 = vst [vmem:[#allocation8 + $0x10] sm:$0xff] %v1005
    %1062 = vst [vmem:[#allocation8 + $0x18] sm:$0xff] %v1008
    %1063 = vst [vmem:[#allocation8 + $0x20] sm:$0xff] %v1013
    %1064 = vst [vmem:[#allocation8 + $0x28] sm:$0xff] %v1016
    %1065 = vst [vmem:[#allocation8 + $0x30] sm:$0xff] %v1021
    %1066 = vst [vmem:[#allocation8 + $0x38] sm:$0xff] %v1024
    %1067 = vst [vmem:[#allocation8 + $0x40] sm:$0xff] %v1029
    %1068 = vst [vmem:[#allocation8 + $0x48] sm:$0xff] %v1032
    %1069 = vst [vmem:[#allocation8 + $0x50] sm:$0xff] %v1037
    %1070 = vst [vmem:[#allocation8 + $0x58] sm:$0xff] %v1040
    %1071 = vst [vmem:[#allocation8 + $0x60] sm:$0xff] %v1045
    %1072 = vst [vmem:[#allocation8 + $0x68] sm:$0xff] %v1048
    %1073 = vst [vmem:[#allocation8 + $0x70] sm:$0xff] %v1053
    %1074 = vst [vmem:[#allocation8 + $0x78] sm:$0xff] %v1056
    // Predicated region
    $region30: #{tpu_custom_call.1} parent=1 // pred_check
      _
    $region31: #{tpu_custom_call.1} parent=1 // pred_check_branch
      %1076 = sbr.rel (0) target = $region33
    $region32: #{tpu_custom_call.1} parent=1 // pred_region
      %s1078 = ssub.s32 2048, 2048
      %1079 = vsyncadd [#allocation4], %s1078
      %s1080 = sshll.u32 [#allocation8], 4
      %s1081 = int_to_ptr.vmem [resolvable:$true] %s1080
      %1086 = dma.vmem_to_hbm [thread:$0]  %s1081, 2048, %s4, [#allocation4], 128, 128, 8
    $region33: #{tpu_custom_call.1} parent=1 // pred_fallthru
      _
    // Predicated region
    $region34: #{tpu_custom_call.1} parent=1 // pred_check
      _
    $region35: #{tpu_custom_call.1} parent=1 // pred_check_branch
      %1088 = sbr.rel (0) target = $region37
    $region36: #{tpu_custom_call.1} parent=1 // pred_region
      %1089 = dma.done [#allocation4], 2048
    $region37: #{tpu_custom_call.1} parent=1 // pred_fallthru
      _
    %1090 = vsyncpa [#allocation3], 1
    %1091 = vsyncpa [#allocation6], 1
    %1092 = vsyncpa [#allocation4], 1

</llo_original>
